<compile_context>
chip_gen: v5e
topology: v5e:2x2
jax: 0.10.0
libtpu: 0.0.40
codegen_flags: <defaults>
</compile_context>

<pallas_src>
import numpy as np
import jax
import jax.numpy as jnp
from jax.experimental import pallas as pl
from jax.experimental.pallas import tpu as pltpu


# ----------------------------------------------------------------------------
# Setup-time construction of the shared per-channel pyramid operator (numpy).
# ----------------------------------------------------------------------------
def _haar_level_np(x):
    """One FWT level: (B, C, H, W) -> (B, 4C, H/2, W/2), subband-major."""
    a = x[:, :, 0::2, 0::2]
    b = x[:, :, 0::2, 1::2]
    c = x[:, :, 1::2, 0::2]
    d = x[:, :, 1::2, 1::2]
    return np.concatenate(
        [(a + b + c + d), (a - b + c - d), (a + b - c - d), (a - b - c + d)],
        axis=1) * 0.5


def build_pyramid_operator(H, W, dtype=np.float32):
    """Per-channel pyramid operator Tt[n, tree] of shape (HW, HW).

    For a single channel image v (flattened row-major to length HW), the full
    pyramid (all levels down to 1x1) flattened in subband-major order is
    v @ Tt.  Entries are exactly +/- 2^-log2(W), so bf16 storage is lossless.
    """
    assert H == W and H >= 1 and (H & (H - 1)) == 0, (
        "pyramid terminates only for square power-of-2 spatial dims")
    HW = H * W
    # Propagate the HW spatial basis images (as channels) through the pyramid;
    # after all levels the channel index is tree*HW + n, so T[tree, n] reads
    # off directly and the subband ordering is exact by construction.
    y = np.eye(HW, dtype=np.float64).reshape(1, HW, H, W)
    while y.shape[-1] > 1:
        y = _haar_level_np(y)
    T = y[0, :, 0, 0].reshape(HW, HW)          # T[tree, n]
    return np.ascontiguousarray(T.T).astype(dtype)   # Tt[n, tree]


# ----------------------------------------------------------------------------
# Pallas kernel: single fused GEMM over the whole pyramid (per-channel op).
# ----------------------------------------------------------------------------
def _pyramid_matmul_kernel(x_ref, t_ref, o_ref):
    # x_ref: (tm, HW)  activation rows (b*C + c major)
    # t_ref: (HW, HW)  shared bf16 pyramid operator, VMEM-resident
    # o_ref: (tm, HW)  lane-dense output rows
    t = t_ref[...].astype(jnp.float32)          # lossless bf16 -> f32 decode
    o_ref[...] = jnp.dot(
        x_ref[...], t, preferred_element_type=jnp.float32
    ).astype(o_ref.dtype)


def _pick_row_tile(bc):
    """Row tile: full block for small batches, 256-row slabs when large."""
    if bc >= 512 and bc % 256 == 0:
        return 256
    return bc


def wavelet_attention_forward(x, t_op):
    """Equivalent of WaveletAttention_NEW_BABY.forward(FWT, x)."""
    B, C, H, W = x.shape
    HW = H * W
    if W <= 1:                                  # while-loop body never runs
        return x.reshape(B, -1)
    assert t_op.shape == (HW, HW)

    BC = B * C
    x2 = x.reshape(BC, HW)                      # contiguous -> free reshape
    tm = _pick_row_tile(BC)
    grid = (BC // tm,)

    op_bytes = HW * HW * t_op.dtype.itemsize
    io_bytes = 2 * BC * HW * x.dtype.itemsize
    cost = pl.CostEstimate(flops=2 * BC * HW * HW,
                           transcendentals=0,
                           bytes_accessed=op_bytes + io_bytes)

    y = pl.pallas_call(
        _pyramid_matmul_kernel,
        out_shape=jax.ShapeDtypeStruct((BC, HW), x.dtype),
        grid=grid,
        in_specs=[
            pl.BlockSpec((tm, HW), lambda i: (i, 0)),   # streamed activations
            pl.BlockSpec((HW, HW), lambda i: (0, 0)),   # resident operator
        ],
        out_specs=pl.BlockSpec((tm, HW), lambda i: (i, 0)),
        compiler_params=pltpu.CompilerParams(
            dimension_semantics=("parallel",)),
        cost_estimate=cost,
    )(x2, t_op)

    # Channel interleave: out[b, tree*C + c] = y[b*C + c, tree].
    # Tiny (B*C*HW elements) reorder; done in XLA outside the kernel.
    return y.reshape(B, C, HW).transpose(0, 2, 1).reshape(B, C * HW)


# ----------------------------------------------------------------------------
# Plain-JAX level-by-level reference (mirrors the PyTorch control flow).
# ----------------------------------------------------------------------------
def _haar_level_jax(x):
    a = x[:, :, 0::2, 0::2]
    b = x[:, :, 0::2, 1::2]
    c = x[:, :, 1::2, 0::2]
    d = x[:, :, 1::2, 1::2]
    return jnp.concatenate(
        [(a + b + c + d), (a - b + c - d), (a + b - c - d), (a - b - c + d)],
        axis=1) * 0.5


def _ref_forward(x):
    while x.shape[-1] > 1:
        x = _haar_level_jax(x)
    return x.reshape(x.shape[0], -1)


if __name__ == "__main__":
    B, C, H, W = 2, 4, 16, 16
    key = jax.random.PRNGKey(0)
    x = jax.random.normal(key, (B, C, H, W), dtype=jnp.float32)

    # Shared per-channel pyramid operator; entries are +/-1/16 -> exact bf16.
    t_op = jnp.asarray(build_pyramid_operator(H, W), dtype=jnp.bfloat16)

    fwd = jax.jit(wavelet_attention_forward)
    out = jax.block_until_ready(fwd(x, t_op))

    assert out.shape == (B, C * H * W), out.shape
    ref = _ref_forward(x)
    assert jnp.allclose(out, ref, atol=1e-4, rtol=1e-4), "mismatch vs reference"
    print("KERNEL_OK")
</pallas_src>

<mosaic_0001>
module attributes {stable_mosaic.version = 11 : i64} {
  func.func @_pyramid_matmul_kernel(%arg0: i32, %arg1: memref<8x256xf32, #tpu.memory_space<vmem>>, %arg2: memref<256x256xbf16, #tpu.memory_space<vmem>>, %arg3: memref<8x256xf32, #tpu.memory_space<vmem>>) attributes {dimension_semantics = [#tpu.dimension_semantics<parallel>], iteration_bounds = array<i64: 1>, scalar_prefetch = 0 : i64, scratch_operands = 0 : i64, tpu.core_type = #tpu.core_type<tc>, window_params = [{transform_indices = @transform_0, window_bounds = array<i64: 8, 256>}, {pipeline_mode = #tpu.pipeline_mode<synchronous>, transform_indices = @transform_1, window_bounds = array<i64: 256, 256>}, {transform_indices = @transform_2, window_bounds = array<i64: 8, 256>}]} {
    %c0 = arith.constant 0 : index
    %c0_0 = arith.constant 0 : index
    %0 = vector.load %arg2[%c0, %c0_0] : memref<256x256xbf16, #tpu.memory_space<vmem>>, vector<256x256xbf16>
    %1 = arith.extf %0 : vector<256x256xbf16> to vector<256x256xf32>
    %c0_1 = arith.constant 0 : index
    %c0_2 = arith.constant 0 : index
    %2 = vector.load %arg1[%c0_1, %c0_2] : memref<8x256xf32, #tpu.memory_space<vmem>>, vector<8x256xf32>
    %cst = arith.constant dense<0.000000e+00> : vector<8x256xf32>
    %3 = tpu.matmul %2, %1, %cst {dimension_numbers = #tpu.dot_dimension_numbers<[1], [0], [0], [1], [0, 0, 1, 1], [], []>} : vector<8x256xf32>, vector<256x256xf32>, vector<8x256xf32> -> vector<8x256xf32>
    %c0_3 = arith.constant 0 : index
    %c0_4 = arith.constant 0 : index
    %4 = vector.load %arg3[%c0_3, %c0_4] : memref<8x256xf32, #tpu.memory_space<vmem>>, vector<8x256xf32>
    tpu.vector_store %arg3[%c0_3, %c0_4], %3 {strides = array<i32>} : memref<8x256xf32, #tpu.memory_space<vmem>>, vector<8x256xf32>,
    return
  }
  func.func @transform_0(%arg0: i32) -> (i32, i32) {
    %c0_i32 = arith.constant 0 : i32
    %c0_i32_0 = arith.constant 0 : i32
    return %arg0, %c0_i32 : i32, i32
  }
  func.func @transform_1(%arg0: i32) -> (i32, i32) {
    %c0_i32 = arith.constant 0 : i32
    %c0_i32_0 = arith.constant 0 : i32
    %c0_i32_1 = arith.constant 0 : i32
    return %c0_i32, %c0_i32_0 : i32, i32
  }
  func.func @transform_2(%arg0: i32) -> (i32, i32) {
    %c0_i32 = arith.constant 0 : i32
    %c0_i32_0 = arith.constant 0 : i32
    return %arg0, %c0_i32 : i32, i32
  }
}

</mosaic_0001>

<llo_original>
// kernel: wavelet_attention_forward.1
$region0: #{wavelet_attention_forward.1}
  #allocation0 [shape = 'u32[]', space=smem, size = 0x4, offset = 0x4, fixed_abs, tag = 'smem constant byte address 0x4 - core index']
  #allocation1 [shape = 'u32[72,128]{1,0:T(1,128)}', space=vmem, size = 0x9000, scoped, tag = 'internal scratch']
  %s0 = inlined_call_operand.vmem [shape: f32[8,256], index: 0, kind: input, shape index: {}]
  %s1 = inlined_call_operand.hbm [shape: bf16[256,256], index: 1, kind: input, shape index: {}]
  %s2 = inlined_call_operand.vmem [shape: f32[8,256], index: 2, kind: output, shape index: {}]
  %s3 = sld [smem:[#allocation0]]
  $region22: #{wavelet_attention_forward.1} parent=0
    _
  %s5 = ssub.s32 1, %s3
  %s6 = scalar_select 0, %s5, %s3
  $region1: #{wavelet_attention_forward.1} parent=0
    #allocation2 [shape = 'u8[131072]{0}', space=vmem, size = 0x20000, scoped, tag = 'input window, operand 1, single buffered']
    #allocation3 [shape = 's32[1]{0}', space=sflag, size = 0x4, scoped, tag = 'scoped memory for wavelet_attention_forward.1']
    %7 = vsyncpa [#allocation3], 0
    // Predicated region
    $region2: #{wavelet_attention_forward.1} parent=1 // pred_check
      _
    $region3: #{wavelet_attention_forward.1} parent=1 // pred_check_branch
      %9 = sbr.rel (0) target = $region5
    $region4: #{wavelet_attention_forward.1} parent=1 // pred_region
      _
    $region5: #{wavelet_attention_forward.1} parent=1 // pred_fallthru
      _
    // Predicated region
    $region6: #{wavelet_attention_forward.1} parent=1 // pred_check
      _
    $region7: #{wavelet_attention_forward.1} parent=1 // pred_check_branch
      %11 = sbr.rel (0) target = $region9
    $region8: #{wavelet_attention_forward.1} parent=1 // pred_region
      %13 = vsyncadd [#allocation3], 0
      %s14 = sshll.u32 %s1, 4
      %s15 = int_to_ptr.hbm [resolvable:$true] %s14
      %s16 = sshll.u32 [#allocation2], 4
      %s17 = int_to_ptr.vmem [resolvable:$true] %s16
      %22 = dma.hbm_to_vmem [thread:$0]  %s15, 4096, %s17, [#allocation3], 128, 128, 8
    $region9: #{wavelet_attention_forward.1} parent=1 // pred_fallthru
      _
    // Predicated region
    $region10: #{wavelet_attention_forward.1} parent=1 // pred_check
      _
    $region11: #{wavelet_attention_forward.1} parent=1 // pred_check_branch
      %24 = sbr.rel (0) target = $region13
    $region12: #{wavelet_attention_forward.1} parent=1 // pred_region
      %26 = dma.done [#allocation3], 4096
    $region13: #{wavelet_attention_forward.1} parent=1 // pred_fallthru
      _
    %v27 = vld [vmem:[#allocation2] sm:$0xff]
    %v28 = vld [vmem:[#allocation2 + $0x8] sm:$0xff]
    %v29 = vld [vmem:[#allocation2 + $0x10] sm:$0xff]
    %v30 = vld [vmem:[#allocation2 + $0x18] sm:$0xff]
    %v31 = vld [vmem:[#allocation2 + $0x20] sm:$0xff]
    %v32 = vld [vmem:[#allocation2 + $0x28] sm:$0xff]
    %v33 = vld [vmem:[#allocation2 + $0x30] sm:$0xff]
    %v34 = vld [vmem:[#allocation2 + $0x38] sm:$0xff]
    %v35 = vld [vmem:[#allocation2 + $0x40] sm:$0xff]
    %v36 = vld [vmem:[#allocation2 + $0x48] sm:$0xff]
    %v37 = vld [vmem:[#allocation2 + $0x50] sm:$0xff]
    %v38 = vld [vmem:[#allocation2 + $0x58] sm:$0xff]
    %v39 = vld [vmem:[#allocation2 + $0x60] sm:$0xff]
    %v40 = vld [vmem:[#allocation2 + $0x68] sm:$0xff]
    %v41 = vld [vmem:[#allocation2 + $0x70] sm:$0xff]
    %v42 = vld [vmem:[#allocation2 + $0x78] sm:$0xff]
    %v43 = vld [vmem:[#allocation2 + $0x80] sm:$0xff]
    %v44 = vld [vmem:[#allocation2 + $0x88] sm:$0xff]
    %v45 = vld [vmem:[#allocation2 + $0x90] sm:$0xff]
    %v46 = vld [vmem:[#allocation2 + $0x98] sm:$0xff]
    %v47 = vld [vmem:[#allocation2 + $0xa0] sm:$0xff]
    %v48 = vld [vmem:[#allocation2 + $0xa8] sm:$0xff]
    %v49 = vld [vmem:[#allocation2 + $0xb0] sm:$0xff]
    %v50 = vld [vmem:[#allocation2 + $0xb8] sm:$0xff]
    %v51 = vld [vmem:[#allocation2 + $0xc0] sm:$0xff]
    %v52 = vld [vmem:[#allocation2 + $0xc8] sm:$0xff]
    %v53 = vld [vmem:[#allocation2 + $0xd0] sm:$0xff]
    %v54 = vld [vmem:[#allocation2 + $0xd8] sm:$0xff]
    %v55 = vld [vmem:[#allocation2 + $0xe0] sm:$0xff]
    %v56 = vld [vmem:[#allocation2 + $0xe8] sm:$0xff]
    %v57 = vld [vmem:[#allocation2 + $0xf0] sm:$0xff]
    %v58 = vld [vmem:[#allocation2 + $0xf8] sm:$0xff]
    %v59 = vunpack.c.l.bf16 %v27
    %v60 = vunpack.c.h.bf16 %v27
    %v61 = vunpack.c.l.bf16 %v28
    %v62 = vunpack.c.h.bf16 %v28
    %v63 = vunpack.c.l.bf16 %v29
    %v64 = vunpack.c.h.bf16 %v29
    %v65 = vunpack.c.l.bf16 %v30
    %v66 = vunpack.c.h.bf16 %v30
    %v67 = vunpack.c.l.bf16 %v31
    %v68 = vunpack.c.h.bf16 %v31
    %v69 = vunpack.c.l.bf16 %v32
    %v70 = vunpack.c.h.bf16 %v32
    %v71 = vunpack.c.l.bf16 %v33
    %v72 = vunpack.c.h.bf16 %v33
    %v73 = vunpack.c.l.bf16 %v34
    %v74 = vunpack.c.h.bf16 %v34
    %v75 = vunpack.c.l.bf16 %v35
    %v76 = vunpack.c.h.bf16 %v35
    %v77 = vunpack.c.l.bf16 %v36
    %v78 = vunpack.c.h.bf16 %v36
    %v79 = vunpack.c.l.bf16 %v37
    %v80 = vunpack.c.h.bf16 %v37
    %v81 = vunpack.c.l.bf16 %v38
    %v82 = vunpack.c.h.bf16 %v38
    %v83 = vunpack.c.l.bf16 %v39
    %v84 = vunpack.c.h.bf16 %v39
    %v85 = vunpack.c.l.bf16 %v40
    %v86 = vunpack.c.h.bf16 %v40
    %v87 = vunpack.c.l.bf16 %v41
    %v88 = vunpack.c.h.bf16 %v41
    %v89 = vunpack.c.l.bf16 %v42
    %v90 = vunpack.c.h.bf16 %v42
    %v91 = vunpack.c.l.bf16 %v43
    %v92 = vunpack.c.h.bf16 %v43
    %v93 = vunpack.c.l.bf16 %v44
    %v94 = vunpack.c.h.bf16 %v44
    %v95 = vunpack.c.l.bf16 %v45
    %v96 = vunpack.c.h.bf16 %v45
    %v97 = vunpack.c.l.bf16 %v46
    %v98 = vunpack.c.h.bf16 %v46
    %v99 = vunpack.c.l.bf16 %v47
    %v100 = vunpack.c.h.bf16 %v47
    %v101 = vunpack.c.l.bf16 %v48
    %v102 = vunpack.c.h.bf16 %v48
    %v103 = vunpack.c.l.bf16 %v49
    %v104 = vunpack.c.h.bf16 %v49
    %v105 = vunpack.c.l.bf16 %v50
    %v106 = vunpack.c.h.bf16 %v50
    %v107 = vunpack.c.l.bf16 %v51
    %v108 = vunpack.c.h.bf16 %v51
    %v109 = vunpack.c.l.bf16 %v52
    %v110 = vunpack.c.h.bf16 %v52
    %v111 = vunpack.c.l.bf16 %v53
    %v112 = vunpack.c.h.bf16 %v53
    %v113 = vunpack.c.l.bf16 %v54
    %v114 = vunpack.c.h.bf16 %v54
    %v115 = vunpack.c.l.bf16 %v55
    %v116 = vunpack.c.h.bf16 %v55
    %v117 = vunpack.c.l.bf16 %v56
    %v118 = vunpack.c.h.bf16 %v56
    %v119 = vunpack.c.l.bf16 %v57
    %v120 = vunpack.c.h.bf16 %v57
    %v121 = vunpack.c.l.bf16 %v58
    %v122 = vunpack.c.h.bf16 %v58
    %v123 = vld [vmem:[%s0] sm:$0xff]
    %v124 = vld [vmem:[%s0 + $0x8] sm:$0xff]
    %125 = vmatpush.msra.mxu0 %v89
    %126 = vmatpush.msra.mxu0 %v87
    %127 = vmatpush.msra.mxu0 %v85
    %128 = vmatpush.msra.mxu0 %v83
    %129 = vmatpush.msra.mxu0 %v81
    %130 = vmatpush.msra.mxu0 %v79
    %131 = vmatpush.msra.mxu0 %v77
    %132 = vmatpush.msra.mxu0 %v75
    %133 = vmatpush.msra.mxu0 %v73
    %134 = vmatpush.msra.mxu0 %v71
    %135 = vmatpush.msra.mxu0 %v69
    %136 = vmatpush.msra.mxu0 %v67
    %137 = vmatpush.msra.mxu0 %v65
    %138 = vmatpush.msra.mxu0 %v63
    %139 = vmatpush.msra.mxu0 %v61
    %140 = vmatpush.msra.mxu0 %v59
    %141 = vmatmul.f32.gmra.mxu0 %v123
    %v142 = vpop.f32.mrf.mxu0
    %v143 = vadd.f32 0.0, %v142
    %144 = vdwg.mxu0
    %145 = vmatpush.msra.mxu0 %v121
    %146 = vmatpush.msra.mxu0 %v119
    %147 = vmatpush.msra.mxu0 %v117
    %148 = vmatpush.msra.mxu0 %v115
    %149 = vmatpush.msra.mxu0 %v113
    %150 = vmatpush.msra.mxu0 %v111
    %151 = vmatpush.msra.mxu0 %v109
    %152 = vmatpush.msra.mxu0 %v107
    %153 = vmatpush.msra.mxu0 %v105
    %154 = vmatpush.msra.mxu0 %v103
    %155 = vmatpush.msra.mxu0 %v101
    %156 = vmatpush.msra.mxu0 %v99
    %157 = vmatpush.msra.mxu0 %v97
    %158 = vmatpush.msra.mxu0 %v95
    %159 = vmatpush.msra.mxu0 %v93
    %160 = vmatpush.msra.mxu0 %v91
    %161 = vmatmul.f32.gmra.mxu0 %v124
    %v162 = vpop.f32.mrf.mxu0
    %v163 = vadd.f32 %v143, %v162
    %164 = vdwg.mxu0
    %165 = vmatpush.msra.mxu0 %v90
    %166 = vmatpush.msra.mxu0 %v88
    %167 = vmatpush.msra.mxu0 %v86
    %168 = vmatpush.msra.mxu0 %v84
    %169 = vmatpush.msra.mxu0 %v82
    %170 = vmatpush.msra.mxu0 %v80
    %171 = vmatpush.msra.mxu0 %v78
    %172 = vmatpush.msra.mxu0 %v76
    %173 = vmatpush.msra.mxu0 %v74
    %174 = vmatpush.msra.mxu0 %v72
    %175 = vmatpush.msra.mxu0 %v70
    %176 = vmatpush.msra.mxu0 %v68
    %177 = vmatpush.msra.mxu0 %v66
    %178 = vmatpush.msra.mxu0 %v64
    %179 = vmatpush.msra.mxu0 %v62
    %180 = vmatpush.msra.mxu0 %v60
    %181 = vmatmul.f32.gmra.mxu0 %v123
    %v182 = vpop.f32.mrf.mxu0
    %v183 = vadd.f32 0.0, %v182
    %184 = vdwg.mxu0
    %185 = vmatpush.msra.mxu0 %v122
    %186 = vmatpush.msra.mxu0 %v120
    %187 = vmatpush.msra.mxu0 %v118
    %188 = vmatpush.msra.mxu0 %v116
    %189 = vmatpush.msra.mxu0 %v114
    %190 = vmatpush.msra.mxu0 %v112
    %191 = vmatpush.msra.mxu0 %v110
    %192 = vmatpush.msra.mxu0 %v108
    %193 = vmatpush.msra.mxu0 %v106
    %194 = vmatpush.msra.mxu0 %v104
    %195 = vmatpush.msra.mxu0 %v102
    %196 = vmatpush.msra.mxu0 %v100
    %197 = vmatpush.msra.mxu0 %v98
    %198 = vmatpush.msra.mxu0 %v96
    %199 = vmatpush.msra.mxu0 %v94
    %200 = vmatpush.msra.mxu0 %v92
    %201 = vmatmul.f32.gmra.mxu0 %v124
    %v202 = vpop.f32.mrf.mxu0
    %v203 = vadd.f32 %v183, %v202
    %204 = vdwg.mxu0
    %205 = vst [vmem:[%s2] sm:$0xff] %v163
    %206 = vst [vmem:[%s2 + $0x8] sm:$0xff] %v203
    // Predicated region
    $region14: #{wavelet_attention_forward.1} parent=1 // pred_check
      _
    $region15: #{wavelet_attention_forward.1} parent=1 // pred_check_branch
      %208 = sbr.rel (0) target = $region17
    $region16: #{wavelet_attention_forward.1} parent=1 // pred_region
      _
    $region17: #{wavelet_attention_forward.1} parent=1 // pred_fallthru
      _
    // Predicated region
    $region18: #{wavelet_attention_forward.1} parent=1 // pred_check
      _
    $region19: #{wavelet_attention_forward.1} parent=1 // pred_check_branch
      %210 = sbr.rel (0) target = $region21
    $region20: #{wavelet_attention_forward.1} parent=1 // pred_region
      _
    $region21: #{wavelet_attention_forward.1} parent=1 // pred_fallthru
      _
    %211 = vsyncpa [#allocation3], 1

</llo_original>
